<compile_context>
chip_gen: v5e
topology: v5e:2x2
jax: 0.10.0
libtpu: 0.0.40
codegen_flags: <defaults>
</compile_context>

<pallas_src>
import jax
import jax.numpy as jnp
from jax.experimental import pallas as pl
from jax.experimental.pallas import tpu as pltpu


def _lstm_rollout_kernel(x_ref, h0_ref, c0_ref, wx_ref, wh_ref, b_ref,
                         out_ref, h_sc, c_sc):
    """One LSTMCell step per grid iteration; h/c carried in VMEM scratch.

    x_ref  : (1, N, D)   per-step input slice (streamed over the T grid axis)
    h0_ref : (N, H)      initial hidden state (consumed only at t == 0)
    c0_ref : (N, H)      initial cell state   (consumed only at t == 0)
    wx_ref : (D, 4H)     W_ih^T with g-gate columns pre-scaled by 2
    wh_ref : (H, 4H)     W_hh^T with g-gate columns pre-scaled by 2
    b_ref  : (1, 4H)     (b_ih + b_hh) with g-gate entries pre-scaled by 2
    out_ref: (1, N, 2H)  per-step [h_new | c_new], lane-dense
    h_sc   : (N, H) f32  VMEM scratch, persists across grid iterations
    c_sc   : (N, H) f32  VMEM scratch, persists across grid iterations
    """
    t = pl.program_id(0)
    H = c0_ref.shape[-1]

    @pl.when(t == 0)
    def _():
        h_sc[...] = h0_ref[...].astype(jnp.float32)
        c_sc[...] = c0_ref[...].astype(jnp.float32)

    x_t = x_ref[0].astype(jnp.float32)                       # (N, D)

    # Two MXU dots (f32 accumulate) + broadcast bias add.
    gates = (
        jnp.dot(x_t, wx_ref[...], preferred_element_type=jnp.float32)
        + jnp.dot(h_sc[...], wh_ref[...], preferred_element_type=jnp.float32)
        + b_ref[...]
    )                                                        # (N, 4H)

    # Single EUP pass over the whole gates vreg; g recovered via
    # tanh(z) = 2*sigmoid(2z) - 1 (the 2z pre-scale is baked into the weights).
    sig = jax.nn.sigmoid(gates)
    i = sig[:, 0 * H:1 * H]
    f = sig[:, 1 * H:2 * H]
    g = 2.0 * sig[:, 2 * H:3 * H] - 1.0
    o = sig[:, 3 * H:4 * H]

    c_new = f * c_sc[...] + i * g
    h_new = o * jnp.tanh(c_new)

    c_sc[...] = c_new
    h_sc[...] = h_new

    # Single lane-dense (N, 2H) store: [h_new | c_new].
    out_ref[0] = jnp.concatenate([h_new, c_new], axis=-1).astype(out_ref.dtype)


def lstm_rollout_pallas(xs, h0, c0, wx, wh, b):
    """Run T LSTMCell steps in one pallas_call.

    xs : (T, N, D) float32
    h0 : (N, H), c0 : (N, H)
    wx : (D, 4H), wh : (H, 4H), b : (1, 4H)   (g-gate columns pre-scaled by 2)
    Returns (T, N, 2H): per-step [h_t | c_t].
    """
    T, N, D = xs.shape
    H = c0.shape[-1]

    return pl.pallas_call(
        _lstm_rollout_kernel,
        out_shape=jax.ShapeDtypeStruct((T, N, 2 * H), jnp.float32),
        grid_spec=pltpu.PrefetchScalarGridSpec(
            num_scalar_prefetch=0,
            grid=(T,),
            in_specs=[
                # x_t streamed per grid step (auto double-buffered).
                pl.BlockSpec((1, N, D), lambda t: (t, 0, 0)),
                # Initial state: constant index -> DMA'd once, read at t==0.
                pl.BlockSpec((N, H), lambda t: (0, 0)),
                pl.BlockSpec((N, H), lambda t: (0, 0)),
                # Weights / bias pinned resident in VMEM (constant index_map).
                pl.BlockSpec((D, 4 * H), lambda t: (0, 0)),
                pl.BlockSpec((H, 4 * H), lambda t: (0, 0)),
                pl.BlockSpec((1, 4 * H), lambda t: (0, 0)),
            ],
            out_specs=pl.BlockSpec((1, N, 2 * H), lambda t: (t, 0, 0)),
            scratch_shapes=[
                pltpu.VMEM((N, H), jnp.float32),   # h carry
                pltpu.VMEM((N, H), jnp.float32),   # c carry (kept f32 always)
            ],
        ),
        compiler_params=pltpu.CompilerParams(
            dimension_semantics=("arbitrary",)),   # sequential recurrence
    )(xs, h0, c0, wx, wh, b)


class LSTMLayer1Pallas:
    """JAX/Pallas port of LSTMLayer1 (forward pass only)."""

    def __init__(self, num_P, num_A, inputs_dim, outputs_dim, key):
        self.num_P = num_P
        self.num_A = num_A
        self.outputs_dim = outputs_dim
        H = outputs_dim

        k1, k2 = jax.random.split(key)
        ortho = jax.nn.initializers.orthogonal()
        # PyTorch nn.LSTMCell params: weight_ih (4H, D), weight_hh (4H, H),
        # biases init to 0, weights orthogonal (use_orthogonal=True).
        w_ih = jnp.asarray(ortho(k1, (4 * H, inputs_dim), jnp.float32))
        w_hh = jnp.asarray(ortho(k2, (4 * H, H), jnp.float32))
        bias = jnp.zeros((4 * H,), jnp.float32)            # b_ih + b_hh == 0

        # Unscaled transposed weights, kept for the pure-JAX reference check.
        self.w_ih_t = w_ih.T                                # (D, 4H)
        self.w_hh_t = w_hh.T                                # (H, 4H)
        self.bias = bias                                    # (4H,)

        # Pre-scale the g-gate columns by 2 so one sigmoid pass covers all
        # four gates: tanh(z) = 2*sigmoid(2z) - 1.
        gate_scale = jnp.ones((4 * H,), jnp.float32).at[2 * H:3 * H].set(2.0)
        self.wx = self.w_ih_t * gate_scale[None, :]         # (D, 4H)
        self.wh = self.w_hh_t * gate_scale[None, :]         # (H, 4H)
        self.b = (bias * gate_scale)[None, :]               # (1, 4H)

        # TODO(synk): self.norm (nn.LayerNorm) exists in __init__ but is never
        # applied in forward(), so it is intentionally not implemented.

    def __call__(self, x, h):
        """Single LSTMCell step, matching LSTMLayer1.forward semantics."""
        N = self.num_P + self.num_A
        H = self.outputs_dim

        h = jnp.squeeze(h, axis=1)                  # (2N, H); explicit axis
        h0, c0 = h[:N], h[N:2 * N]                  # split along dim=-2
        if x.shape[0] > 2:                          # mirrors `if len(x) > 2:`
            x = x.reshape(-1, x.shape[-1])
            h0 = h0.reshape(-1, h0.shape[-1])
            c0 = c0.reshape(-1, c0.shape[-1])

        out = lstm_rollout_pallas(x[None], h0, c0, self.wx, self.wh, self.b)
        h_new = out[0, :, :H]                                  # (N, H)
        c_new = out[0, :, H:]                                  # (N, H)
        h_cat = jnp.concatenate([h_new, c_new], axis=0)[:, None, :]  # (2N,1,H)
        return h_new, h_cat


# -------------------------- pure-JAX references ----------------------------

def _lstm_cell_ref(x, h, c, w_ih_t, w_hh_t, bias):
    gates = x @ w_ih_t + h @ w_hh_t + bias[None, :]
    H = h.shape[-1]
    i = jax.nn.sigmoid(gates[:, 0 * H:1 * H])
    f = jax.nn.sigmoid(gates[:, 1 * H:2 * H])
    g = jnp.tanh(gates[:, 2 * H:3 * H])
    o = jax.nn.sigmoid(gates[:, 3 * H:4 * H])
    c_new = f * c + i * g
    h_new = o * jnp.tanh(c_new)
    return h_new, c_new


def _lstm_rollout_ref(xs, h0, c0, w_ih_t, w_hh_t, bias):
    def step(carry, x_t):
        h, c = carry
        h, c = _lstm_cell_ref(x_t, h, c, w_ih_t, w_hh_t, bias)
        return (h, c), (h, c)

    _, (hs, cs) = jax.lax.scan(step, (h0, c0), xs)
    return hs, cs


if __name__ == "__main__":
    key = jax.random.PRNGKey(0)
    k_param, k_x, k_h, k_seq = jax.random.split(key, 4)

    num_P, num_A = 3, 5               # batch N = 8
    inputs_dim, outputs_dim = 32, 32  # D = H = 32
    N = num_P + num_A
    H = outputs_dim

    layer = LSTMLayer1Pallas(num_P, num_A, inputs_dim, outputs_dim, k_param)

    # ---- single-step forward (the module's actual semantics) ----
    x = jax.random.normal(k_x, (N, inputs_dim), jnp.float32)
    h = jax.random.normal(k_h, (2 * N, 1, outputs_dim), jnp.float32)

    x_out, h_out = layer(x, h)
    x_out = jax.block_until_ready(x_out)
    h_out = jax.block_until_ready(h_out)

    assert x_out.shape == (N, outputs_dim)
    assert h_out.shape == (2 * N, 1, outputs_dim)

    h_sq = jnp.squeeze(h, axis=1)
    ref_h, ref_c = _lstm_cell_ref(x, h_sq[:N], h_sq[N:],
                                  layer.w_ih_t, layer.w_hh_t, layer.bias)
    assert jnp.allclose(x_out, ref_h, atol=1e-5, rtol=1e-5)
    assert jnp.allclose(h_out[:, 0, :],
                        jnp.concatenate([ref_h, ref_c], axis=0),
                        atol=1e-5, rtol=1e-5)

    # ---- time-fused rollout (grid=(T,), weights pinned, h/c in VMEM) ----
    T = 8
    xs = jax.random.normal(k_seq, (T, N, inputs_dim), jnp.float32)
    out_seq = jax.block_until_ready(
        lstm_rollout_pallas(xs, h_sq[:N], h_sq[N:], layer.wx, layer.wh, layer.b))
    assert out_seq.shape == (T, N, 2 * H)

    ref_hs, ref_cs = _lstm_rollout_ref(xs, h_sq[:N], h_sq[N:],
                                       layer.w_ih_t, layer.w_hh_t, layer.bias)
    assert jnp.allclose(out_seq[:, :, :H], ref_hs, atol=1e-5, rtol=1e-5)
    assert jnp.allclose(out_seq[:, :, H:], ref_cs, atol=1e-5, rtol=1e-5)

    print("KERNEL_OK")
</pallas_src>

<mosaic_0001>
module attributes {stable_mosaic.version = 11 : i64} {
  func.func @_lstm_rollout_kernel(%arg0: i32, %arg1: memref<1x8x32xf32, #tpu.memory_space<vmem>>, %arg2: memref<8x32xf32, #tpu.memory_space<vmem>>, %arg3: memref<8x32xf32, #tpu.memory_space<vmem>>, %arg4: memref<32x128xf32, #tpu.memory_space<vmem>>, %arg5: memref<32x128xf32, #tpu.memory_space<vmem>>, %arg6: memref<1x128xf32, #tpu.memory_space<vmem>>, %arg7: memref<1x8x64xf32, #tpu.memory_space<vmem>>, %arg8: memref<8x32xf32, #tpu.memory_space<vmem>>, %arg9: memref<8x32xf32, #tpu.memory_space<vmem>>) attributes {dimension_semantics = [#tpu.dimension_semantics<arbitrary>], iteration_bounds = array<i64: 1>, scalar_prefetch = 0 : i64, scratch_operands = 2 : i64, tpu.core_type = #tpu.core_type<tc>, window_params = [{transform_indices = @transform_0, window_bounds = array<i64: 1, 8, 32>}, {pipeline_mode = #tpu.pipeline_mode<synchronous>, transform_indices = @transform_1, window_bounds = array<i64: 8, 32>}, {pipeline_mode = #tpu.pipeline_mode<synchronous>, transform_indices = @transform_2, window_bounds = array<i64: 8, 32>}, {pipeline_mode = #tpu.pipeline_mode<synchronous>, transform_indices = @transform_3, window_bounds = array<i64: 32, 128>}, {pipeline_mode = #tpu.pipeline_mode<synchronous>, transform_indices = @transform_4, window_bounds = array<i64: 32, 128>}, {pipeline_mode = #tpu.pipeline_mode<synchronous>, transform_indices = @transform_5, window_bounds = array<i64: 1, 128>}, {transform_indices = @transform_6, window_bounds = array<i64: 1, 8, 64>}]} {
    %c0_i32 = arith.constant 0 : i32
    %0 = arith.cmpi eq, %arg0, %c0_i32 : i32
    %1 = arith.extui %0 : i1 to i32
    %c0_i32_0 = arith.constant 0 : i32
    %2 = arith.cmpi ne, %1, %c0_i32_0 : i32
    scf.if %2 {
      %c0_24 = arith.constant 0 : index
      %c0_25 = arith.constant 0 : index
      %39 = vector.load %arg2[%c0_24, %c0_25] : memref<8x32xf32, #tpu.memory_space<vmem>>, vector<8x32xf32>
      %c0_26 = arith.constant 0 : index
      %c0_27 = arith.constant 0 : index
      %40 = vector.load %arg8[%c0_26, %c0_27] : memref<8x32xf32, #tpu.memory_space<vmem>>, vector<8x32xf32>
      tpu.vector_store %arg8[%c0_26, %c0_27], %39 {strides = array<i32>} : memref<8x32xf32, #tpu.memory_space<vmem>>, vector<8x32xf32>,
      %c0_28 = arith.constant 0 : index
      %c0_29 = arith.constant 0 : index
      %41 = vector.load %arg3[%c0_28, %c0_29] : memref<8x32xf32, #tpu.memory_space<vmem>>, vector<8x32xf32>
      %c0_30 = arith.constant 0 : index
      %c0_31 = arith.constant 0 : index
      %42 = vector.load %arg9[%c0_30, %c0_31] : memref<8x32xf32, #tpu.memory_space<vmem>>, vector<8x32xf32>
      tpu.vector_store %arg9[%c0_30, %c0_31], %41 {strides = array<i32>} : memref<8x32xf32, #tpu.memory_space<vmem>>, vector<8x32xf32>,
    } else {
    }
    %c0 = arith.constant 0 : index
    %c0_1 = arith.constant 0 : index
    %c0_2 = arith.constant 0 : index
    %3 = vector.load %arg1[%c0, %c0_1, %c0_2] : memref<1x8x32xf32, #tpu.memory_space<vmem>>, vector<1x8x32xf32>
    %4 = vector.shape_cast %3 : vector<1x8x32xf32> to vector<8x32xf32>
    %c0_3 = arith.constant 0 : index
    %c0_4 = arith.constant 0 : index
    %5 = vector.load %arg4[%c0_3, %c0_4] : memref<32x128xf32, #tpu.memory_space<vmem>>, vector<32x128xf32>
    %cst = arith.constant dense<0.000000e+00> : vector<8x128xf32>
    %6 = tpu.matmul %4, %5, %cst {dimension_numbers = #tpu.dot_dimension_numbers<[1], [0], [0], [1], [0, 0, 1, 1], [], []>} : vector<8x32xf32>, vector<32x128xf32>, vector<8x128xf32> -> vector<8x128xf32>
    %c0_5 = arith.constant 0 : index
    %c0_6 = arith.constant 0 : index
    %7 = vector.load %arg8[%c0_5, %c0_6] : memref<8x32xf32, #tpu.memory_space<vmem>>, vector<8x32xf32>
    %c0_7 = arith.constant 0 : index
    %c0_8 = arith.constant 0 : index
    %8 = vector.load %arg5[%c0_7, %c0_8] : memref<32x128xf32, #tpu.memory_space<vmem>>, vector<32x128xf32>
    %cst_9 = arith.constant dense<0.000000e+00> : vector<8x128xf32>
    %9 = tpu.matmul %7, %8, %cst_9 {dimension_numbers = #tpu.dot_dimension_numbers<[1], [0], [0], [1], [0, 0, 1, 1], [], []>} : vector<8x32xf32>, vector<32x128xf32>, vector<8x128xf32> -> vector<8x128xf32>
    %10 = arith.addf %6, %9 : vector<8x128xf32>
    %c0_10 = arith.constant 0 : index
    %c0_11 = arith.constant 0 : index
    %11 = vector.load %arg6[%c0_10, %c0_11] : memref<1x128xf32, #tpu.memory_space<vmem>>, vector<1x128xf32>
    %12 = vector.broadcast %11 : vector<1x128xf32> to vector<8x128xf32>
    %13 = arith.addf %10, %12 : vector<8x128xf32>
    %14 = arith.negf %13 : vector<8x128xf32>
    %15 = math.exp %14 : vector<8x128xf32>
    %cst_12 = arith.constant 1.000000e+00 : f32
    %16 = vector.broadcast %cst_12 : f32 to vector<8x128xf32>
    %17 = arith.addf %16, %15 : vector<8x128xf32>
    %18 = arith.divf %16, %17 : vector<8x128xf32>
    %19 = vector.extract_strided_slice %18 {offsets = [0, 0], sizes = [8, 32], strides = [1, 1]} : vector<8x128xf32> to vector<8x32xf32>
    %20 = vector.extract_strided_slice %18 {offsets = [0, 32], sizes = [8, 32], strides = [1, 1]} : vector<8x128xf32> to vector<8x32xf32>
    %21 = vector.extract_strided_slice %18 {offsets = [0, 64], sizes = [8, 32], strides = [1, 1]} : vector<8x128xf32> to vector<8x32xf32>
    %cst_13 = arith.constant 2.000000e+00 : f32
    %22 = vector.broadcast %cst_13 : f32 to vector<8x32xf32>
    %23 = arith.mulf %22, %21 : vector<8x32xf32>
    %cst_14 = arith.constant 1.000000e+00 : f32
    %24 = vector.broadcast %cst_14 : f32 to vector<8x32xf32>
    %25 = arith.subf %23, %24 : vector<8x32xf32>
    %26 = vector.extract_strided_slice %18 {offsets = [0, 96], sizes = [8, 32], strides = [1, 1]} : vector<8x128xf32> to vector<8x32xf32>
    %c0_15 = arith.constant 0 : index
    %c0_16 = arith.constant 0 : index
    %27 = vector.load %arg9[%c0_15, %c0_16] : memref<8x32xf32, #tpu.memory_space<vmem>>, vector<8x32xf32>
    %28 = arith.mulf %20, %27 : vector<8x32xf32>
    %29 = arith.mulf %19, %25 : vector<8x32xf32>
    %30 = arith.addf %28, %29 : vector<8x32xf32>
    %31 = math.tanh %30 : vector<8x32xf32>
    %32 = arith.mulf %26, %31 : vector<8x32xf32>
    %c0_17 = arith.constant 0 : index
    %c0_18 = arith.constant 0 : index
    %33 = vector.load %arg9[%c0_17, %c0_18] : memref<8x32xf32, #tpu.memory_space<vmem>>, vector<8x32xf32>
    tpu.vector_store %arg9[%c0_17, %c0_18], %30 {strides = array<i32>} : memref<8x32xf32, #tpu.memory_space<vmem>>, vector<8x32xf32>,
    %c0_19 = arith.constant 0 : index
    %c0_20 = arith.constant 0 : index
    %34 = vector.load %arg8[%c0_19, %c0_20] : memref<8x32xf32, #tpu.memory_space<vmem>>, vector<8x32xf32>
    tpu.vector_store %arg8[%c0_19, %c0_20], %32 {strides = array<i32>} : memref<8x32xf32, #tpu.memory_space<vmem>>, vector<8x32xf32>,
    %35 = tpu.concatenate %32, %30 in 1 : vector<8x32xf32>, vector<8x32xf32> -> vector<8x64xf32>
    %c0_21 = arith.constant 0 : index
    %c0_22 = arith.constant 0 : index
    %c0_23 = arith.constant 0 : index
    %36 = vector.load %arg7[%c0_21, %c0_22, %c0_23] : memref<1x8x64xf32, #tpu.memory_space<vmem>>, vector<1x8x64xf32>
    %37 = vector.shape_cast %36 : vector<1x8x64xf32> to vector<8x64xf32>
    %38 = vector.shape_cast %35 : vector<8x64xf32> to vector<1x8x64xf32>
    tpu.vector_store %arg7[%c0_21, %c0_22, %c0_23], %38 {strides = array<i32>} : memref<1x8x64xf32, #tpu.memory_space<vmem>>, vector<1x8x64xf32>,
    return
  }
  func.func @transform_0(%arg0: i32) -> (i32, i32, i32) {
    %c0_i32 = arith.constant 0 : i32
    %c0_i32_0 = arith.constant 0 : i32
    %c0_i32_1 = arith.constant 0 : i32
    return %arg0, %c0_i32, %c0_i32_0 : i32, i32, i32
  }
  func.func @transform_1(%arg0: i32) -> (i32, i32) {
    %c0_i32 = arith.constant 0 : i32
    %c0_i32_0 = arith.constant 0 : i32
    %c0_i32_1 = arith.constant 0 : i32
    return %c0_i32, %c0_i32_0 : i32, i32
  }
  func.func @transform_2(%arg0: i32) -> (i32, i32) {
    %c0_i32 = arith.constant 0 : i32
    %c0_i32_0 = arith.constant 0 : i32
    %c0_i32_1 = arith.constant 0 : i32
    return %c0_i32, %c0_i32_0 : i32, i32
  }
  func.func @transform_3(%arg0: i32) -> (i32, i32) {
    %c0_i32 = arith.constant 0 : i32
    %c0_i32_0 = arith.constant 0 : i32
    %c0_i32_1 = arith.constant 0 : i32
    return %c0_i32, %c0_i32_0 : i32, i32
  }
  func.func @transform_4(%arg0: i32) -> (i32, i32) {
    %c0_i32 = arith.constant 0 : i32
    %c0_i32_0 = arith.constant 0 : i32
    %c0_i32_1 = arith.constant 0 : i32
    return %c0_i32, %c0_i32_0 : i32, i32
  }
  func.func @transform_5(%arg0: i32) -> (i32, i32) {
    %c0_i32 = arith.constant 0 : i32
    %c0_i32_0 = arith.constant 0 : i32
    %c0_i32_1 = arith.constant 0 : i32
    return %c0_i32, %c0_i32_0 : i32, i32
  }
  func.func @transform_6(%arg0: i32) -> (i32, i32, i32) {
    %c0_i32 = arith.constant 0 : i32
    %c0_i32_0 = arith.constant 0 : i32
    %c0_i32_1 = arith.constant 0 : i32
    return %arg0, %c0_i32, %c0_i32_0 : i32, i32, i32
  }
}

</mosaic_0001>

<llo_original>
// kernel: tpu_custom_call.1
$region0: #{tpu_custom_call.1}
  #allocation0 [shape = 'u32[]', space=smem, size = 0x4, offset = 0x4, fixed_abs, tag = 'smem constant byte address 0x4 - core index']
  #allocation1 [shape = 'u32[72,128]{1,0:T(1,128)}', space=vmem, size = 0x9000, scoped, tag = 'internal scratch']
  #allocation2 [shape = 'f32[8,32]{1,0:T(8,128)}', space=vmem, size = 0x1000, scoped, tag = 'scratch operand']
  #allocation3 [shape = 'f32[8,32]{1,0:T(8,128)}', space=vmem, size = 0x1000, scoped, tag = 'scratch operand']
  %s0 = inlined_call_operand.hbm [shape: f32[1,8,32], index: 0, kind: input, shape index: {}]
  %s1 = inlined_call_operand.hbm [shape: f32[8,32], index: 1, kind: input, shape index: {}]
  %s2 = inlined_call_operand.hbm [shape: f32[8,32], index: 2, kind: input, shape index: {}]
  %s3 = inlined_call_operand.hbm [shape: f32[32,128], index: 3, kind: input, shape index: {}]
  %s4 = inlined_call_operand.hbm [shape: f32[32,128], index: 4, kind: input, shape index: {}]
  %s5 = inlined_call_operand.vmem [shape: f32[1,128], index: 5, kind: input, shape index: {}]
  %s6 = inlined_call_operand.hbm [shape: f32[1,8,64], index: 6, kind: output, shape index: {}]
  %s7 = sld [smem:[#allocation0]]
  $region58: #{tpu_custom_call.1} parent=0
    _
  %s9 = ssub.s32 1, %s7
  %s10 = scalar_select 0, %s9, %s7
  $region1: #{tpu_custom_call.1} parent=0
    #allocation4 [shape = 'u8[4096]{0}', space=vmem, size = 0x1000, scoped, tag = 'input window, operand 0, single buffered']
    #allocation5 [shape = 's32[1]{0}', space=sflag, size = 0x4, scoped, tag = 'scoped memory for tpu_custom_call.1']
    #allocation6 [shape = 's32[1]{0}', space=sflag, size = 0x4, scoped, tag = 'scoped memory for tpu_custom_call.1']
    #allocation7 [shape = 'u8[4096]{0}', space=vmem, size = 0x1000, scoped, tag = 'input window, operand 1, single buffered']
    #allocation8 [shape = 's32[1]{0}', space=sflag, size = 0x4, scoped, tag = 'scoped memory for tpu_custom_call.1']
    #allocation9 [shape = 'u8[4096]{0}', space=vmem, size = 0x1000, scoped, tag = 'input window, operand 2, single buffered']
    #allocation10 [shape = 'u8[16384]{0}', space=vmem, size = 0x4000, scoped, tag = 'input window, operand 3, single buffered']
    #allocation11 [shape = 's32[1]{0}', space=sflag, size = 0x4, scoped, tag = 'scoped memory for tpu_custom_call.1']
    #allocation12 [shape = 'u8[16384]{0}', space=vmem, size = 0x4000, scoped, tag = 'input window, operand 4, single buffered']
    #allocation13 [shape = 'u8[4096]{0}', space=vmem, size = 0x1000, scoped, tag = 'output window, operand 0, single buffered']
    %11 = vsyncpa [#allocation5], 0
    %12 = vsyncpa [#allocation8], 0
    %13 = vsyncpa [#allocation11], 0
    %14 = vsyncpa [#allocation6], 0
    // Predicated region
    $region2: #{tpu_custom_call.1} parent=1 // pred_check
      _
    $region3: #{tpu_custom_call.1} parent=1 // pred_check_branch
      %16 = sbr.rel (0) target = $region5
    $region4: #{tpu_custom_call.1} parent=1 // pred_region
      %18 = vsyncadd [#allocation5], 0
      %s20 = sshll.u32 %s0, 4
      %s21 = int_to_ptr.hbm [resolvable:$true] %s20
      %s22 = sshll.u32 [#allocation4], 4
      %s23 = int_to_ptr.vmem [resolvable:$true] %s22
      %25 = dma.hbm_to_vmem [thread:$0]  %s21, 128, %s23, [#allocation5]
    $region5: #{tpu_custom_call.1} parent=1 // pred_fallthru
      _
    // Predicated region
    $region6: #{tpu_custom_call.1} parent=1 // pred_check
      _
    $region7: #{tpu_custom_call.1} parent=1 // pred_check_branch
      %27 = sbr.rel (0) target = $region9
    $region8: #{tpu_custom_call.1} parent=1 // pred_region
      %29 = vsyncadd [#allocation8], 0
      %s31 = sshll.u32 %s1, 4
      %s32 = int_to_ptr.hbm [resolvable:$true] %s31
      %s33 = sshll.u32 [#allocation7], 4
      %s34 = int_to_ptr.vmem [resolvable:$true] %s33
      %36 = dma.hbm_to_vmem [thread:$0]  %s32, 128, %s34, [#allocation8]
    $region9: #{tpu_custom_call.1} parent=1 // pred_fallthru
      _
    // Predicated region
    $region10: #{tpu_custom_call.1} parent=1 // pred_check
      _
    $region11: #{tpu_custom_call.1} parent=1 // pred_check_branch
      %38 = sbr.rel (0) target = $region13
    $region12: #{tpu_custom_call.1} parent=1 // pred_region
      %40 = vsyncadd [#allocation8], 0
      %s42 = sshll.u32 %s2, 4
      %s43 = int_to_ptr.hbm [resolvable:$true] %s42
      %s44 = sshll.u32 [#allocation9], 4
      %s45 = int_to_ptr.vmem [resolvable:$true] %s44
      %47 = dma.hbm_to_vmem [thread:$0]  %s43, 128, %s45, [#allocation8]
    $region13: #{tpu_custom_call.1} parent=1 // pred_fallthru
      _
    // Predicated region
    $region14: #{tpu_custom_call.1} parent=1 // pred_check
      _
    $region15: #{tpu_custom_call.1} parent=1 // pred_check_branch
      %49 = sbr.rel (0) target = $region17
    $region16: #{tpu_custom_call.1} parent=1 // pred_region
      %51 = vsyncadd [#allocation11], 0
      %s52 = sshll.u32 %s3, 4
      %s53 = int_to_ptr.hbm [resolvable:$true] %s52
      %s54 = sshll.u32 [#allocation10], 4
      %s55 = int_to_ptr.vmem [resolvable:$true] %s54
      %60 = dma.hbm_to_vmem [thread:$0]  %s53, 512, %s55, [#allocation11], 128, 128, 8
    $region17: #{tpu_custom_call.1} parent=1 // pred_fallthru
      _
    // Predicated region
    $region18: #{tpu_custom_call.1} parent=1 // pred_check
      _
    $region19: #{tpu_custom_call.1} parent=1 // pred_check_branch
      %62 = sbr.rel (0) target = $region21
    $region20: #{tpu_custom_call.1} parent=1 // pred_region
      %64 = vsyncadd [#allocation11], 0
      %s65 = sshll.u32 %s4, 4
      %s66 = int_to_ptr.hbm [resolvable:$true] %s65
      %s67 = sshll.u32 [#allocation12], 4
      %s68 = int_to_ptr.vmem [resolvable:$true] %s67
      %73 = dma.hbm_to_vmem [thread:$0]  %s66, 512, %s68, [#allocation11], 128, 128, 8
    $region21: #{tpu_custom_call.1} parent=1 // pred_fallthru
      _
    // Predicated region
    $region22: #{tpu_custom_call.1} parent=1 // pred_check
      _
    $region23: #{tpu_custom_call.1} parent=1 // pred_check_branch
      %75 = sbr.rel (0) target = $region25
    $region24: #{tpu_custom_call.1} parent=1 // pred_region
      _
    $region25: #{tpu_custom_call.1} parent=1 // pred_fallthru
      _
    // Predicated region
    $region26: #{tpu_custom_call.1} parent=1 // pred_check
      _
    $region27: #{tpu_custom_call.1} parent=1 // pred_check_branch
      %77 = sbr.rel (0) target = $region29
    $region28: #{tpu_custom_call.1} parent=1 // pred_region
      %79 = dma.done [#allocation5], 128
    $region29: #{tpu_custom_call.1} parent=1 // pred_fallthru
      _
    // Predicated region
    $region30: #{tpu_custom_call.1} parent=1 // pred_check
      _
    $region31: #{tpu_custom_call.1} parent=1 // pred_check_branch
      %81 = sbr.rel (0) target = $region33
    $region32: #{tpu_custom_call.1} parent=1 // pred_region
      %83 = dma.done [#allocation8], 128
    $region33: #{tpu_custom_call.1} parent=1 // pred_fallthru
      _
    // Predicated region
    $region34: #{tpu_custom_call.1} parent=1 // pred_check
      _
    $region35: #{tpu_custom_call.1} parent=1 // pred_check_branch
      %85 = sbr.rel (0) target = $region37
    $region36: #{tpu_custom_call.1} parent=1 // pred_region
      %87 = dma.done [#allocation8], 128
    $region37: #{tpu_custom_call.1} parent=1 // pred_fallthru
      _
    // Predicated region
    $region38: #{tpu_custom_call.1} parent=1 // pred_check
      _
    $region39: #{tpu_custom_call.1} parent=1 // pred_check_branch
      %89 = sbr.rel (0) target = $region41
    $region40: #{tpu_custom_call.1} parent=1 // pred_region
      %91 = dma.done [#allocation11], 512
    $region41: #{tpu_custom_call.1} parent=1 // pred_fallthru
      _
    // Predicated region
    $region42: #{tpu_custom_call.1} parent=1 // pred_check
      _
    $region43: #{tpu_custom_call.1} parent=1 // pred_check_branch
      %93 = sbr.rel (0) target = $region45
    $region44: #{tpu_custom_call.1} parent=1 // pred_region
      %95 = dma.done [#allocation11], 512
    $region45: #{tpu_custom_call.1} parent=1 // pred_fallthru
      _
    %p96 = scmp.eq.s32.totalorder 0, 0
    // Predicated region
    $region46: #{tpu_custom_call.1} parent=1 // pred_check
      %p97 = pneg %p96
    $region47: #{tpu_custom_call.1} parent=1 // pred_check_branch
      %99 = sbr.rel (%p97) target = $region49
    $region48: #{tpu_custom_call.1} parent=1 // pred_region
      %v100 = vld [vmem:[#allocation7] sm:$0xff]
      %vm101 = vcmask 261120
      %102 = vst.msk [vmem:[#allocation2] sm:$0xff] %vm101, %v100
      %v103 = vld [vmem:[#allocation9] sm:$0xff]
      %104 = vst.msk [vmem:[#allocation3] sm:$0xff] %vm101, %v103
    $region49: #{tpu_custom_call.1} parent=1 // pred_fallthru
      _
    %v105 = vld [vmem:[#allocation4] sm:$0xff]
    %v106 = vld [vmem:[#allocation10] sm:$0xff]
    %v107 = vld [vmem:[#allocation10 + $0x8] sm:$0xff]
    %v108 = vld [vmem:[#allocation10 + $0x10] sm:$0xff]
    %v109 = vld [vmem:[#allocation10 + $0x18] sm:$0xff]
    %v110 = vld [vmem:[#allocation2] sm:$0xff]
    %v111 = vld [vmem:[#allocation12] sm:$0xff]
    %v112 = vld [vmem:[#allocation12 + $0x8] sm:$0xff]
    %v113 = vld [vmem:[#allocation12 + $0x10] sm:$0xff]
    %v114 = vld [vmem:[#allocation12 + $0x18] sm:$0xff]
    %vm115 = vcmask 261120
    %v117 = vsel %vm115, %v110, 0
    %119 = vmatpush.msra.mxu0 0.0
    %120 = vmatpush.msra.mxu0 0.0
    %121 = vmatpush.msra.mxu0 0.0
    %122 = vmatpush.msra.mxu0 0.0
    %123 = vmatpush.msra.mxu0 0.0
    %124 = vmatpush.msra.mxu0 0.0
    %125 = vmatpush.msra.mxu0 0.0
    %126 = vmatpush.msra.mxu0 0.0
    %127 = vmatpush.msra.mxu0 0.0
    %128 = vmatpush.msra.mxu0 0.0
    %129 = vmatpush.msra.mxu0 0.0
    %130 = vmatpush.msra.mxu0 0.0
    %131 = vmatpush.msra.mxu0 %v114
    %132 = vmatpush.msra.mxu0 %v113
    %133 = vmatpush.msra.mxu0 %v112
    %134 = vmatpush.msra.mxu0 %v111
    %135 = vmatmul.f32.gmra.mxu0 %v117
    %v136 = vpop.f32.mrf.mxu0
    %v137 = vadd.f32 0.0, %v136
    %138 = vdwg.mxu0
    %v140 = vsel %vm115, %v105, 0
    %142 = vmatpush.msra.mxu0 0.0
    %143 = vmatpush.msra.mxu0 0.0
    %144 = vmatpush.msra.mxu0 0.0
    %145 = vmatpush.msra.mxu0 0.0
    %146 = vmatpush.msra.mxu0 0.0
    %147 = vmatpush.msra.mxu0 0.0
    %148 = vmatpush.msra.mxu0 0.0
    %149 = vmatpush.msra.mxu0 0.0
    %150 = vmatpush.msra.mxu0 0.0
    %151 = vmatpush.msra.mxu0 0.0
    %152 = vmatpush.msra.mxu0 0.0
    %153 = vmatpush.msra.mxu0 0.0
    %154 = vmatpush.msra.mxu0 %v109
    %155 = vmatpush.msra.mxu0 %v108
    %156 = vmatpush.msra.mxu0 %v107
    %157 = vmatpush.msra.mxu0 %v106
    %158 = vmatmul.f32.gmra.mxu0 %v140
    %v159 = vpop.f32.mrf.mxu0
    %v160 = vadd.f32 %v137, %v159
    %161 = vdwg.mxu0
    %v162 = vld [vmem:[%s5] sm:$0x1]
    %v164 = vperm.slane %v162, 0
    %v166 = vadd.f32 %v160, %v164
    %v167 = vxor.u32 %v166, 2147483648
    %v168 = vmul.f32 %v167, 1.442695
    %v169 = vpow.pop %v168
    %v170 = vadd.f32 %v169, 1.0
    %v171 = vrcp.pop %v170
    %v172 = vmul.f32 %v170, %v171
    %v173 = vsub.f32 1.0, %v172
    %v174 = vmul.f32 %v171, %v173
    %v175 = vadd.f32 %v171, %v174
    %vm176 = vweird.f32 %v170
    %vm177 = vweird.f32 %v171
    %vm178 = vmor %vm176, %vm177
    %v179 = vsel %vm178, %v171, %v175
    %v180 = vand.u32 2147483647, %v170
    %vm181 = vcmp.eq.f32.partialorder %v180, 8.507059e+37
    %v182 = vand.u32 %v170, 2147483648
    %v183 = vor.u32 1.1754944e-38, %v182
    %v184 = vsel %vm181, %v183, %v179
    %v185 = vmul.f32 1.0, %v184
    %v186 = vmul.f32 %v185, 2.0
    %v187 = vsub.f32 %v186, 1.0
    %v188 = vld [vmem:[#allocation3] sm:$0xff]
    %190 = vrot.lane.b32.xlu0 %v188, 32
    %v191 = vpop.permute.xlu0 %190
    %v193 = vmul.f32 %v185, %v191
    %195 = vrot.lane.b32.xlu0 %v187, 64
    %v196 = vpop.permute.xlu0 %195
    %v198 = vmul.f32 %v185, %v196
    %200 = vrot.lane.b32.xlu0 %v198, 32
    %v201 = vpop.permute.xlu0 %200
    %v203 = vadd.f32 %v193, %v201
    %v204 = vtanh.pop %v203
    %206 = vrot.lane.b32.xlu0 %v204, 64
    %v207 = vpop.permute.xlu0 %206
    %v209 = vmul.f32 %v185, %v207
    %211 = vrot.lane.b32.xlu0 %v203, 96
    %v212 = vpop.permute.xlu0 %211
    %214 = vst.msk [vmem:[#allocation3] sm:$0xff] %vm115, %v212
    %216 = vrot.lane.b32.xlu0 %v209, 32
    %v217 = vpop.permute.xlu0 %216
    %219 = vst.msk [vmem:[#allocation2] sm:$0xff] %vm115, %v217
    %v220 = vsel %vm115, %v217, %v203
    %vm221 = vcmask 523264
    %222 = vst.msk [vmem:[#allocation13] sm:$0xff] %vm221, %v220
    // Predicated region
    $region50: #{tpu_custom_call.1} parent=1 // pred_check
      _
    $region51: #{tpu_custom_call.1} parent=1 // pred_check_branch
      %224 = sbr.rel (0) target = $region53
    $region52: #{tpu_custom_call.1} parent=1 // pred_region
      %226 = vsyncadd [#allocation6], 0
      %s228 = sshll.u32 [#allocation13], 4
      %s229 = int_to_ptr.vmem [resolvable:$true] %s228
      %s230 = sshll.u32 %s6, 4
      %s231 = int_to_ptr.hbm [resolvable:$true] %s230
      %233 = dma.vmem_to_hbm [thread:$0]  %s229, 128, %s231, [#allocation6]
    $region53: #{tpu_custom_call.1} parent=1 // pred_fallthru
      _
    // Predicated region
    $region54: #{tpu_custom_call.1} parent=1 // pred_check
      _
    $region55: #{tpu_custom_call.1} parent=1 // pred_check_branch
      %235 = sbr.rel (0) target = $region57
    $region56: #{tpu_custom_call.1} parent=1 // pred_region
      %237 = dma.done [#allocation6], 128
    $region57: #{tpu_custom_call.1} parent=1 // pred_fallthru
      _
    %238 = vsyncpa [#allocation5], 1
    %239 = vsyncpa [#allocation8], 1
    %240 = vsyncpa [#allocation11], 1
    %241 = vsyncpa [#allocation6], 1

</llo_original>
